<compile_context>
chip_gen: v7x
topology: tpu7x:2x2x1
jax: 0.10.0
libtpu: 0.0.40
codegen_flags: <defaults>
</compile_context>

<pallas_src>
import functools

import jax
import jax.numpy as jnp
from jax import lax
from jax.experimental import pallas as pl
from jax.experimental.pallas import tpu as pltpu


# ----------------------------------------------------------------------------- helpers
def _full_spec(shape):
    n = len(shape)
    return pl.BlockSpec(shape, lambda *args, _n=n: (0,) * _n)


def _row_tile(n):
    """Node-row tile for the N^2 tensors.

    Prefer 256-row tiles (fills the 256-wide MXU M dim on v6e/v7x) when the graph is big
    enough, otherwise the largest divisor that still yields >= 2 tiles so the row grid can
    be sharded across both v7x TensorCores and double-buffered.
    """
    for t in (256, 128, 64, 32, 16, 8):
        if n % t == 0 and n // t >= 2:
            return t
    return n


# ----------------------------------------------------------------------------- kernels
def gat_proj_kernel(feat_ref, w_ref, a_self_ref, a_neigh_ref,
                    h_ref, attn_self_ref, attn_neigh_ref):
    """h = feat @ W; attn_self (N,1) on VPU; attn_neigh as a lane-dense (1,N) row."""
    h = jnp.dot(feat_ref[...], w_ref[...], preferred_element_type=jnp.float32)  # (N, O)
    h_ref[...] = h
    # VPU multiply + lane reduction instead of a 1-lane-wide MXU matmul (review item).
    attn_self_ref[...] = jnp.sum(h * a_self_ref[...], axis=-1, keepdims=True)   # (N, 1)
    # (1, N): contract a_neigh (O,1) dim 0 with h (N,O) dim 1 -> lane-dense row result.
    attn_neigh_ref[...] = lax.dot_general(
        a_neigh_ref[...], h, (((0,), (1,)), ((), ())),
        preferred_element_type=jnp.float32)                                     # (1, N)


def gat_attn_kernel(m_ref, h_ref, attn_self_ref, attn_neigh_ref, out_ref,
                    *, alpha, normalize):
    """Row-blocked GAT attention: one (TILE, N) slab of scores -> (TILE, O) features."""
    m = m_ref[...]                                                   # (T, N) row slab
    dense = (attn_self_ref[...] + attn_neigh_ref[...]) * m           # (T,1)+(1,N) bcast
    dense = jnp.where(dense > 0, dense, alpha * dense)               # LeakyReLU(alpha)
    # M is the row-normalized adjacency here, so supp(M) == supp(adj): mask with M>0 and
    # drop the separate adj f32 stream (saves one full N^2 HBM stream + VMEM buffer).
    # TODO(synk): if M is ever a smoothed / multi-hop proximity matrix, reinstate adj.
    masked = jnp.where(m > 0, dense, -9e15)                          # scalar fill
    mx = jnp.max(masked, axis=1, keepdims=True)                      # softmax dim=1
    e = jnp.exp(masked - mx)
    attn = e * pl.reciprocal(jnp.sum(e, axis=1, keepdims=True), approx=True)
    # bf16 MXU operands, f32 accumulation (softmax itself stays f32).
    hp = jnp.dot(attn.astype(jnp.bfloat16), h_ref[...].astype(jnp.bfloat16),
                 preferred_element_type=jnp.float32)                 # (T, O)
    act = jnp.where(hp > 0, hp, jnp.expm1(hp))                       # ELU
    if normalize:  # fused F.normalize(h, p=2, dim=1) for the final layer
        ssq = jnp.sum(act * act, axis=1, keepdims=True)
        act = act * lax.rsqrt(jnp.maximum(ssq, 1e-24))
    out_ref[...] = act


def decoder_q_kernel(z_tile_ref, z_full_ref, mu_ref, mu_sq_ref,
                     a_pred_ref, q_ref, *, v):
    """A_pred row slab = sigmoid(z_tile z^T); student-t soft assignment q."""
    zt16 = z_tile_ref[...].astype(jnp.bfloat16)                      # (T, E)
    logits = lax.dot_general(zt16, z_full_ref[...].astype(jnp.bfloat16),
                             (((1,), (1,)), ((), ())),
                             preferred_element_type=jnp.float32)     # (T, N)
    a_pred_ref[...] = jax.nn.sigmoid(logits)

    # ||z_i - mu_k||^2 = 1 - 2 z_i.mu_k + ||mu_k||^2   (z rows are unit L2 norm).
    cross = lax.dot_general(zt16, mu_ref[...].astype(jnp.bfloat16),
                            (((1,), (1,)), ((), ())),
                            preferred_element_type=jnp.float32)      # (T, K)
    dist2 = 1.0 - 2.0 * cross + mu_sq_ref[...]                       # (T, K)
    q = pl.reciprocal(1.0 + dist2 * (1.0 / v), approx=True)
    exponent = (v + 1.0) / 2.0
    if exponent != 1.0:  # v is a static Python constant
        q = q ** exponent
    q_ref[...] = q * pl.reciprocal(jnp.sum(q, axis=1, keepdims=True), approx=True)


# ----------------------------------------------------------------------------- wrapper
def daegc_forward(x, M, params, *, alpha, v):
    """Forward pass of DAEGC.forward(x, adj, M); adj is implied by supp(M)."""
    N = x.shape[0]
    HID = params["w1"].shape[1]
    EMB = params["w2"].shape[1]
    K = params["mu"].shape[0]
    T = _row_tile(N)
    grid_rows = N // T

    # Tiny plain-JAX prep: reshape attention vectors, precompute ||mu_k||^2 (review item).
    a_self1 = params["a_self1"].reshape(1, HID)
    a_self2 = params["a_self2"].reshape(1, EMB)
    mu = params["mu"]
    mu_sq = jnp.sum(mu * mu, axis=1)[None, :]                        # (1, K)

    def proj(feat, w, a_self_row, a_neigh_col):
        n, _ = feat.shape
        o = w.shape[1]
        return pl.pallas_call(
            gat_proj_kernel,
            out_shape=(jax.ShapeDtypeStruct((n, o), jnp.float32),    # h
                       jax.ShapeDtypeStruct((n, 1), jnp.float32),    # attn_self
                       jax.ShapeDtypeStruct((1, n), jnp.float32)),   # attn_neigh row
            grid=(1,),
            in_specs=[_full_spec(feat.shape), _full_spec(w.shape),
                      _full_spec(a_self_row.shape), _full_spec(a_neigh_col.shape)],
            out_specs=(_full_spec((n, o)), _full_spec((n, 1)), _full_spec((1, n))),
            compiler_params=pltpu.CompilerParams(dimension_semantics=("arbitrary",)),
        )(feat, w, a_self_row, a_neigh_col)

    def attn_layer(h, attn_self, attn_neigh, normalize):
        o = h.shape[1]
        kern = functools.partial(gat_attn_kernel, alpha=alpha, normalize=normalize)
        return pl.pallas_call(
            kern,
            out_shape=jax.ShapeDtypeStruct((N, o), jnp.float32),
            grid=(grid_rows,),
            in_specs=[pl.BlockSpec((T, N), lambda i: (i, 0)),        # M row slab
                      _full_spec((N, o)),                            # h, fully resident
                      pl.BlockSpec((T, 1), lambda i: (i, 0)),        # attn_self rows
                      _full_spec((1, N))],                           # attn_neigh row
            out_specs=pl.BlockSpec((T, o), lambda i: (i, 0)),
            compiler_params=pltpu.CompilerParams(dimension_semantics=("parallel",)),
        )(M, h, attn_self, attn_neigh)

    def decode(z):
        kern = functools.partial(decoder_q_kernel, v=v)
        return pl.pallas_call(
            kern,
            out_shape=(jax.ShapeDtypeStruct((N, N), jnp.float32),    # A_pred
                       jax.ShapeDtypeStruct((N, K), jnp.float32)),   # q
            grid=(grid_rows,),
            in_specs=[pl.BlockSpec((T, EMB), lambda i: (i, 0)),      # z row slab
                      _full_spec((N, EMB)),                          # z, fully resident
                      _full_spec(mu.shape),
                      _full_spec((1, K))],
            out_specs=(pl.BlockSpec((T, N), lambda i: (i, 0)),
                       pl.BlockSpec((T, K), lambda i: (i, 0))),
            compiler_params=pltpu.CompilerParams(dimension_semantics=("parallel",)),
        )(z, z, mu, mu_sq)

    # ---- GAT layer 1 ----
    h1p, as1, an1 = proj(x, params["w1"], a_self1, params["a_neigh1"])
    h1 = attn_layer(h1p, as1, an1, normalize=False)
    # ---- GAT layer 2 (+ fused L2 normalize -> z) ----
    h2p, as2, an2 = proj(h1, params["w2"], a_self2, params["a_neigh2"])
    z = attn_layer(h2p, as2, an2, normalize=True)
    # ---- decoder + student-t Q ----
    A_pred, q = decode(z)
    return A_pred, z, q


# ----------------------------------------------------------------------------- params
def _xavier_uniform(key, shape, gain=1.414):
    a = gain * (6.0 / (shape[0] + shape[1])) ** 0.5
    return jax.random.uniform(key, shape, jnp.float32, -a, a)


def _xavier_normal(key, shape):
    std = (2.0 / (shape[0] + shape[1])) ** 0.5
    return std * jax.random.normal(key, shape, dtype=jnp.float32)


if __name__ == "__main__":
    # Small, self-consistent shapes.
    N = 128            # number of graph nodes
    F_IN = 32          # num_features
    HID = 64           # hidden_size
    EMB = 16           # embedding_size
    K = 8              # num_clusters
    ALPHA = 0.2        # LeakyReLU slope
    V = 1.0            # student-t degrees of freedom

    key = jax.random.PRNGKey(0)
    kx, kadj, kw1, ka1s, ka1n, kw2, ka2s, ka2n, kmu = jax.random.split(key, 9)

    # Deterministic parameters (GAT layer 1, layer 2, cluster centers).
    params = {
        "w1": _xavier_uniform(kw1, (F_IN, HID)),
        "a_self1": _xavier_uniform(ka1s, (HID, 1)),
        "a_neigh1": _xavier_uniform(ka1n, (HID, 1)),
        "w2": _xavier_uniform(kw2, (HID, EMB)),
        "a_self2": _xavier_uniform(ka2s, (EMB, 1)),
        "a_neigh2": _xavier_uniform(ka2n, (EMB, 1)),
        "mu": _xavier_normal(kmu, (K, EMB)),
    }

    # Inputs: node features, symmetric binary adjacency with self-loops,
    # and its row-normalized form M (plain-JAX glue).  The kernels mask with M > 0,
    # so adj itself is never shipped to the device kernels.
    x = jax.random.normal(kx, (N, F_IN), dtype=jnp.float32)
    r = jax.random.uniform(kadj, (N, N))
    adj = (((r + r.T) > 1.7).astype(jnp.float32) + jnp.eye(N, dtype=jnp.float32))
    adj = jnp.clip(adj, 0.0, 1.0)
    M = adj / jnp.sum(adj, axis=1, keepdims=True)

    A_pred, z, q = daegc_forward(x, M, params, alpha=ALPHA, v=V)
    jax.block_until_ready((A_pred, z, q))

    assert A_pred.shape == (N, N) and z.shape == (N, EMB) and q.shape == (N, K)
    assert bool(jnp.all(jnp.isfinite(A_pred))) and bool(jnp.all(jnp.isfinite(q)))
    print("KERNEL_OK")
</pallas_src>

<mosaic_0001>
module attributes {stable_mosaic.version = 11 : i64} {
  func.func @gat_proj_kernel(%arg0: i32, %arg1: memref<128x32xf32, #tpu.memory_space<vmem>>, %arg2: memref<32x64xf32, #tpu.memory_space<vmem>>, %arg3: memref<1x64xf32, #tpu.memory_space<vmem>>, %arg4: memref<64x1xf32, #tpu.memory_space<vmem>>, %arg5: memref<128x64xf32, #tpu.memory_space<vmem>>, %arg6: memref<128x1xf32, #tpu.memory_space<vmem>>, %arg7: memref<1x128xf32, #tpu.memory_space<vmem>>) attributes {dimension_semantics = [#tpu.dimension_semantics<arbitrary>], iteration_bounds = array<i64: 1>, scalar_prefetch = 0 : i64, scratch_operands = 0 : i64, tpu.core_type = #tpu.core_type<tc>, window_params = [{pipeline_mode = #tpu.pipeline_mode<synchronous>, transform_indices = @transform_0, window_bounds = array<i64: 128, 32>}, {pipeline_mode = #tpu.pipeline_mode<synchronous>, transform_indices = @transform_1, window_bounds = array<i64: 32, 64>}, {pipeline_mode = #tpu.pipeline_mode<synchronous>, transform_indices = @transform_2, window_bounds = array<i64: 1, 64>}, {pipeline_mode = #tpu.pipeline_mode<synchronous>, transform_indices = @transform_3, window_bounds = array<i64: 64, 1>}, {pipeline_mode = #tpu.pipeline_mode<synchronous>, transform_indices = @transform_4, window_bounds = array<i64: 128, 64>}, {pipeline_mode = #tpu.pipeline_mode<synchronous>, transform_indices = @transform_5, window_bounds = array<i64: 128, 1>}, {pipeline_mode = #tpu.pipeline_mode<synchronous>, transform_indices = @transform_6, window_bounds = array<i64: 1, 128>}]} {
    %c0 = arith.constant 0 : index
    %c0_0 = arith.constant 0 : index
    %0 = vector.load %arg1[%c0, %c0_0] : memref<128x32xf32, #tpu.memory_space<vmem>>, vector<128x32xf32>
    %c0_1 = arith.constant 0 : index
    %c0_2 = arith.constant 0 : index
    %1 = vector.load %arg2[%c0_1, %c0_2] : memref<32x64xf32, #tpu.memory_space<vmem>>, vector<32x64xf32>
    %cst = arith.constant dense<0.000000e+00> : vector<128x64xf32>
    %2 = tpu.matmul %0, %1, %cst {dimension_numbers = #tpu.dot_dimension_numbers<[1], [0], [0], [1], [0, 0, 1, 1], [], []>} : vector<128x32xf32>, vector<32x64xf32>, vector<128x64xf32> -> vector<128x64xf32>
    %c0_3 = arith.constant 0 : index
    %c0_4 = arith.constant 0 : index
    %3 = vector.load %arg5[%c0_3, %c0_4] : memref<128x64xf32, #tpu.memory_space<vmem>>, vector<128x64xf32>
    tpu.vector_store %arg5[%c0_3, %c0_4], %2 {strides = array<i32>} : memref<128x64xf32, #tpu.memory_space<vmem>>, vector<128x64xf32>,
    %c0_5 = arith.constant 0 : index
    %c0_6 = arith.constant 0 : index
    %4 = vector.load %arg3[%c0_5, %c0_6] : memref<1x64xf32, #tpu.memory_space<vmem>>, vector<1x64xf32>
    %5 = vector.broadcast %4 : vector<1x64xf32> to vector<128x64xf32>
    %6 = arith.mulf %2, %5 : vector<128x64xf32>
    %cst_7 = arith.constant dense<0.000000e+00> : vector<128xf32>
    %7 = vector.multi_reduction <add>, %6, %cst_7 [1] : vector<128x64xf32> to vector<128xf32>
    %8 = vector.shape_cast %7 : vector<128xf32> to vector<128x1xf32>
    %c0_8 = arith.constant 0 : index
    %c0_9 = arith.constant 0 : index
    %9 = vector.load %arg6[%c0_8, %c0_9] : memref<128x1xf32, #tpu.memory_space<vmem>>, vector<128x1xf32>
    tpu.vector_store %arg6[%c0_8, %c0_9], %8 {strides = array<i32>} : memref<128x1xf32, #tpu.memory_space<vmem>>, vector<128x1xf32>,
    %c0_10 = arith.constant 0 : index
    %c0_11 = arith.constant 0 : index
    %10 = vector.load %arg4[%c0_10, %c0_11] : memref<64x1xf32, #tpu.memory_space<vmem>>, vector<64x1xf32>
    %cst_12 = arith.constant dense<0.000000e+00> : vector<1x128xf32>
    %11 = tpu.matmul %10, %2, %cst_12 {dimension_numbers = #tpu.dot_dimension_numbers<[0], [1], [1], [0], [0, 1, 1, 0], [], []>} : vector<64x1xf32>, vector<128x64xf32>, vector<1x128xf32> -> vector<1x128xf32>
    %c0_13 = arith.constant 0 : index
    %c0_14 = arith.constant 0 : index
    %12 = vector.load %arg7[%c0_13, %c0_14] : memref<1x128xf32, #tpu.memory_space<vmem>>, vector<1x128xf32>
    tpu.vector_store %arg7[%c0_13, %c0_14], %11 {strides = array<i32>} : memref<1x128xf32, #tpu.memory_space<vmem>>, vector<1x128xf32>,
    return
  }
  func.func @transform_0(%arg0: i32) -> (i32, i32) {
    %c0_i32 = arith.constant 0 : i32
    %c0_i32_0 = arith.constant 0 : i32
    %c0_i32_1 = arith.constant 0 : i32
    return %c0_i32, %c0_i32_0 : i32, i32
  }
  func.func @transform_1(%arg0: i32) -> (i32, i32) {
    %c0_i32 = arith.constant 0 : i32
    %c0_i32_0 = arith.constant 0 : i32
    %c0_i32_1 = arith.constant 0 : i32
    return %c0_i32, %c0_i32_0 : i32, i32
  }
  func.func @transform_2(%arg0: i32) -> (i32, i32) {
    %c0_i32 = arith.constant 0 : i32
    %c0_i32_0 = arith.constant 0 : i32
    %c0_i32_1 = arith.constant 0 : i32
    return %c0_i32, %c0_i32_0 : i32, i32
  }
  func.func @transform_3(%arg0: i32) -> (i32, i32) {
    %c0_i32 = arith.constant 0 : i32
    %c0_i32_0 = arith.constant 0 : i32
    %c0_i32_1 = arith.constant 0 : i32
    return %c0_i32, %c0_i32_0 : i32, i32
  }
  func.func @transform_4(%arg0: i32) -> (i32, i32) {
    %c0_i32 = arith.constant 0 : i32
    %c0_i32_0 = arith.constant 0 : i32
    %c0_i32_1 = arith.constant 0 : i32
    return %c0_i32, %c0_i32_0 : i32, i32
  }
  func.func @transform_5(%arg0: i32) -> (i32, i32) {
    %c0_i32 = arith.constant 0 : i32
    %c0_i32_0 = arith.constant 0 : i32
    %c0_i32_1 = arith.constant 0 : i32
    return %c0_i32, %c0_i32_0 : i32, i32
  }
  func.func @transform_6(%arg0: i32) -> (i32, i32) {
    %c0_i32 = arith.constant 0 : i32
    %c0_i32_0 = arith.constant 0 : i32
    %c0_i32_1 = arith.constant 0 : i32
    return %c0_i32, %c0_i32_0 : i32, i32
  }
}

</mosaic_0001>

<llo_original>
// kernel: tpu_custom_call.1
$region0: #{tpu_custom_call.1}
  #allocation0 [shape = 'u32[]', space=smem, size = 0x4, offset = 0x4, fixed_abs, tag = 'smem constant byte address 0x4 - core index']
  #allocation1 [shape = 'u32[144,128]{1,0:T(1,128)}', space=vmem, size = 0x12000, scoped, tag = 'internal scratch']
  %s0 = inlined_call_operand.vmem [shape: f32[128,32], index: 0, kind: input, shape index: {}]
  %s1 = inlined_call_operand.vmem [shape: f32[32,64], index: 1, kind: input, shape index: {}]
  %s2 = inlined_call_operand.vmem [shape: f32[1,64], index: 2, kind: input, shape index: {}]
  %s3 = inlined_call_operand.vmem [shape: f32[64,1], index: 3, kind: input, shape index: {}]
  %s4 = inlined_call_operand.vmem [shape: f32[128,64], index: 4, kind: output, shape index: {0}]
  %s5 = inlined_call_operand.vmem [shape: f32[128,1], index: 5, kind: output, shape index: {1}]
  %s6 = inlined_call_operand.hbm [shape: f32[1,128], index: 6, kind: output, shape index: {2}]
  %7 = xla_tuple %s4, %s5, %s6
  %s8 = sld [smem:[#allocation0]]
  $region42: #{tpu_custom_call.1} parent=0
    _
  %s10 = ssub.s32 1, %s8
  %s11 = scalar_select 0, %s10, %s8
  $region1: #{tpu_custom_call.1} parent=0
    #allocation2 [shape = 'u8[512]{0}', space=vmem, size = 0x400, scoped, tag = 'output window, operand 2, single buffered']
    #allocation3 [shape = 's32[1]{0}', space=sflag, size = 0x4, scoped, tag = 'scoped memory for tpu_custom_call.1']
    %12 = vsyncpa [#allocation3], 0
    // Predicated region
    $region2: #{tpu_custom_call.1} parent=1 // pred_check
      _
    $region3: #{tpu_custom_call.1} parent=1 // pred_check_branch
      %14 = sbr.rel (0) target = $region5
    $region4: #{tpu_custom_call.1} parent=1 // pred_region
      _
    $region5: #{tpu_custom_call.1} parent=1 // pred_fallthru
      _
    // Predicated region
    $region6: #{tpu_custom_call.1} parent=1 // pred_check
      _
    $region7: #{tpu_custom_call.1} parent=1 // pred_check_branch
      %16 = sbr.rel (0) target = $region9
    $region8: #{tpu_custom_call.1} parent=1 // pred_region
      _
    $region9: #{tpu_custom_call.1} parent=1 // pred_fallthru
      _
    // Predicated region
    $region10: #{tpu_custom_call.1} parent=1 // pred_check
      _
    $region11: #{tpu_custom_call.1} parent=1 // pred_check_branch
      %18 = sbr.rel (0) target = $region13
    $region12: #{tpu_custom_call.1} parent=1 // pred_region
      _
    $region13: #{tpu_custom_call.1} parent=1 // pred_fallthru
      _
    // Predicated region
    $region14: #{tpu_custom_call.1} parent=1 // pred_check
      _
    $region15: #{tpu_custom_call.1} parent=1 // pred_check_branch
      %20 = sbr.rel (0) target = $region17
    $region16: #{tpu_custom_call.1} parent=1 // pred_region
      _
    $region17: #{tpu_custom_call.1} parent=1 // pred_fallthru
      _
    %v21 = vld [vmem:[%s0] sm:$0xff]
    %v22 = vld [vmem:[%s0 + $0x8] sm:$0xff]
    %v23 = vld [vmem:[%s0 + $0x10] sm:$0xff]
    %v24 = vld [vmem:[%s0 + $0x18] sm:$0xff]
    %v25 = vld [vmem:[%s0 + $0x20] sm:$0xff]
    %v26 = vld [vmem:[%s0 + $0x28] sm:$0xff]
    %v27 = vld [vmem:[%s0 + $0x30] sm:$0xff]
    %v28 = vld [vmem:[%s0 + $0x38] sm:$0xff]
    %v29 = vld [vmem:[%s0 + $0x40] sm:$0xff]
    %v30 = vld [vmem:[%s0 + $0x48] sm:$0xff]
    %v31 = vld [vmem:[%s0 + $0x50] sm:$0xff]
    %v32 = vld [vmem:[%s0 + $0x58] sm:$0xff]
    %v33 = vld [vmem:[%s0 + $0x60] sm:$0xff]
    %v34 = vld [vmem:[%s0 + $0x68] sm:$0xff]
    %v35 = vld [vmem:[%s0 + $0x70] sm:$0xff]
    %v36 = vld [vmem:[%s0 + $0x78] sm:$0xff]
    %v37 = vld [vmem:[%s1] sm:$0xff]
    %v38 = vld [vmem:[%s1 + $0x8] sm:$0xff]
    %v39 = vld [vmem:[%s1 + $0x10] sm:$0xff]
    %v40 = vld [vmem:[%s1 + $0x18] sm:$0xff]
    %vm41 = vcmask 261120
    %v43 = vsel %vm41, %v21, 0
    %v46 = vsel %vm41, %v22, 0
    %v49 = vsel %vm41, %v23, 0
    %v52 = vsel %vm41, %v24, 0
    %v55 = vsel %vm41, %v25, 0
    %v58 = vsel %vm41, %v26, 0
    %v61 = vsel %vm41, %v27, 0
    %v64 = vsel %vm41, %v28, 0
    %v67 = vsel %vm41, %v29, 0
    %v70 = vsel %vm41, %v30, 0
    %v73 = vsel %vm41, %v31, 0
    %v76 = vsel %vm41, %v32, 0
    %v79 = vsel %vm41, %v33, 0
    %v82 = vsel %vm41, %v34, 0
    %v85 = vsel %vm41, %v35, 0
    %v88 = vsel %vm41, %v36, 0
    %90 = vmatprep.subr.mxu0 0.0
    %91 = vmatpush1.msra.mxu0 %v37
    %92 = vmatprep.subr.mxu0 0.0
    %93 = vmatpush1.msra.mxu0 %v38
    %94 = vmatprep.subr.mxu0 0.0
    %95 = vmatpush1.msra.mxu0 %v39
    %96 = vmatprep.subr.mxu0 0.0
    %97 = vmatpush1.msra.mxu0 %v40
    %98 = vmatprep.subr.mxu0 0.0
    %99 = vmatpush1.msra.mxu0 0.0
    %100 = vmatprep.subr.mxu0 0.0
    %101 = vmatpush1.msra.mxu0 0.0
    %102 = vmatprep.subr.mxu0 0.0
    %103 = vmatpush1.msra.mxu0 0.0
    %104 = vmatprep.subr.mxu0 0.0
    %105 = vmatpush1.msra.mxu0 0.0
    %106 = vmatprep.subr.mxu0 0.0
    %107 = vmatpush1.msra.mxu0 0.0
    %108 = vmatprep.subr.mxu0 0.0
    %109 = vmatpush1.msra.mxu0 0.0
    %110 = vmatprep.subr.mxu0 0.0
    %111 = vmatpush1.msra.mxu0 0.0
    %112 = vmatprep.subr.mxu0 0.0
    %113 = vmatpush1.msra.mxu0 0.0
    %114 = vmatprep.subr.mxu0 0.0
    %115 = vmatpush1.msra.mxu0 0.0
    %116 = vmatprep.subr.mxu0 0.0
    %117 = vmatpush1.msra.mxu0 0.0
    %118 = vmatprep.subr.mxu0 0.0
    %119 = vmatpush1.msra.mxu0 0.0
    %120 = vmatprep.subr.mxu0 0.0
    %121 = vmatpush1.msra.mxu0 0.0
    %122 = vmatprep.subr.mxu0 0.0
    %123 = vmatpush1.msra.mxu0 0.0
    %124 = vmatprep.subr.mxu0 0.0
    %125 = vmatpush1.msra.mxu0 0.0
    %126 = vmatprep.subr.mxu0 0.0
    %127 = vmatpush1.msra.mxu0 0.0
    %128 = vmatprep.subr.mxu0 0.0
    %129 = vmatpush1.msra.mxu0 0.0
    %130 = vmatprep.subr.mxu0 0.0
    %131 = vmatpush1.msra.mxu0 0.0
    %132 = vmatprep.subr.mxu0 0.0
    %133 = vmatpush1.msra.mxu0 0.0
    %134 = vmatprep.subr.mxu0 0.0
    %135 = vmatpush1.msra.mxu0 0.0
    %136 = vmatprep.subr.mxu0 0.0
    %137 = vmatpush1.msra.mxu0 0.0
    %138 = vmatprep.subr.mxu0 0.0
    %139 = vmatpush1.msra.mxu0 0.0
    %140 = vmatprep.subr.mxu0 0.0
    %141 = vmatpush1.msra.mxu0 0.0
    %142 = vmatprep.subr.mxu0 0.0
    %143 = vmatpush1.msra.mxu0 0.0
    %144 = vmatprep.subr.mxu0 0.0
    %145 = vmatpush1.msra.mxu0 0.0
    %146 = vmatprep.subr.mxu0 0.0
    %147 = vmatpush1.msra.mxu0 0.0
    %148 = vmatprep.subr.mxu0 0.0
    %149 = vmatpush1.msra.mxu0 0.0
    %150 = vmatprep.subr.mxu0 0.0
    %151 = vmatpush1.msra.mxu0 0.0
    %152 = vmatprep.subr.mxu0 0.0
    %153 = vmatpush1.msra.mxu0 0.0
    %154 = vmatprep.mubr.f32.mxu0 0.0
    %155 = vmatmul.mubr.f32.gmra.mrb[0].mxu0 %v43
    %v156 = vpop.f32.mrb[0].mxu0
    %v157 = vadd.f32 0.0, %v156
    %v158 = vpop.f32.mrb[0].mxu0
    %159 = vmatprep.mubr.f32.mxu0 0.0
    %160 = vmatmul.mubr.f32.gmra.mrb[0].mxu0 %v46
    %v161 = vpop.f32.mrb[0].mxu0
    %v162 = vadd.f32 0.0, %v161
    %v163 = vpop.f32.mrb[0].mxu0
    %164 = vmatprep.mubr.f32.mxu0 0.0
    %165 = vmatmul.mubr.f32.gmra.mrb[0].mxu0 %v49
    %v166 = vpop.f32.mrb[0].mxu0
    %v167 = vadd.f32 0.0, %v166
    %v168 = vpop.f32.mrb[0].mxu0
    %169 = vmatprep.mubr.f32.mxu0 0.0
    %170 = vmatmul.mubr.f32.gmra.mrb[0].mxu0 %v52
    %v171 = vpop.f32.mrb[0].mxu0
    %v172 = vadd.f32 0.0, %v171
    %v173 = vpop.f32.mrb[0].mxu0
    %174 = vmatprep.mubr.f32.mxu0 0.0
    %175 = vmatmul.mubr.f32.gmra.mrb[0].mxu0 %v55
    %v176 = vpop.f32.mrb[0].mxu0
    %v177 = vadd.f32 0.0, %v176
    %v178 = vpop.f32.mrb[0].mxu0
    %179 = vmatprep.mubr.f32.mxu0 0.0
    %180 = vmatmul.mubr.f32.gmra.mrb[0].mxu0 %v58
    %v181 = vpop.f32.mrb[0].mxu0
    %v182 = vadd.f32 0.0, %v181
    %v183 = vpop.f32.mrb[0].mxu0
    %184 = vmatprep.mubr.f32.mxu0 0.0
    %185 = vmatmul.mubr.f32.gmra.mrb[0].mxu0 %v61
    %v186 = vpop.f32.mrb[0].mxu0
    %v187 = vadd.f32 0.0, %v186
    %v188 = vpop.f32.mrb[0].mxu0
    %189 = vmatprep.mubr.f32.mxu0 0.0
    %190 = vmatmul.mubr.f32.gmra.mrb[0].mxu0 %v64
    %v191 = vpop.f32.mrb[0].mxu0
    %v192 = vadd.f32 0.0, %v191
    %v193 = vpop.f32.mrb[0].mxu0
    %194 = vmatprep.mubr.f32.mxu0 0.0
    %195 = vmatmul.mubr.f32.gmra.mrb[0].mxu0 %v67
    %v196 = vpop.f32.mrb[0].mxu0
    %v197 = vadd.f32 0.0, %v196
    %v198 = vpop.f32.mrb[0].mxu0
    %199 = vmatprep.mubr.f32.mxu0 0.0
    %200 = vmatmul.mubr.f32.gmra.mrb[0].mxu0 %v70
    %v201 = vpop.f32.mrb[0].mxu0
    %v202 = vadd.f32 0.0, %v201
    %v203 = vpop.f32.mrb[0].mxu0
    %204 = vmatprep.mubr.f32.mxu0 0.0
    %205 = vmatmul.mubr.f32.gmra.mrb[0].mxu0 %v73
    %v206 = vpop.f32.mrb[0].mxu0
    %v207 = vadd.f32 0.0, %v206
    %v208 = vpop.f32.mrb[0].mxu0
    %209 = vmatprep.mubr.f32.mxu0 0.0
    %210 = vmatmul.mubr.f32.gmra.mrb[0].mxu0 %v76
    %v211 = vpop.f32.mrb[0].mxu0
    %v212 = vadd.f32 0.0, %v211
    %v213 = vpop.f32.mrb[0].mxu0
    %214 = vmatprep.mubr.f32.mxu0 0.0
    %215 = vmatmul.mubr.f32.gmra.mrb[0].mxu0 %v79
    %v216 = vpop.f32.mrb[0].mxu0
    %v217 = vadd.f32 0.0, %v216
    %v218 = vpop.f32.mrb[0].mxu0
    %219 = vmatprep.mubr.f32.mxu0 0.0
    %220 = vmatmul.mubr.f32.gmra.mrb[0].mxu0 %v82
    %v221 = vpop.f32.mrb[0].mxu0
    %v222 = vadd.f32 0.0, %v221
    %v223 = vpop.f32.mrb[0].mxu0
    %224 = vmatprep.mubr.f32.mxu0 0.0
    %225 = vmatmul.mubr.f32.gmra.mrb[0].mxu0 %v85
    %v226 = vpop.f32.mrb[0].mxu0
    %v227 = vadd.f32 0.0, %v226
    %v228 = vpop.f32.mrb[0].mxu0
    %229 = vmatprep.mubr.f32.mxu0 0.0
    %230 = vmatmul.mubr.f32.gmra.mrb[0].mxu0 %v88
    %v231 = vpop.f32.mrb[0].mxu0
    %v232 = vadd.f32 0.0, %v231
    %v233 = vpop.f32.mrb[0].mxu0
    %234 = vdwg.mxu0
    %vm235 = vcmask 523264
    %236 = vst.msk [vmem:[%s4] sm:$0xff] %vm235, %v157
    %237 = vst.msk [vmem:[%s4 + $0x8] sm:$0xff] %vm235, %v162
    %238 = vst.msk [vmem:[%s4 + $0x10] sm:$0xff] %vm235, %v167
    %239 = vst.msk [vmem:[%s4 + $0x18] sm:$0xff] %vm235, %v172
    %240 = vst.msk [vmem:[%s4 + $0x20] sm:$0xff] %vm235, %v177
    %241 = vst.msk [vmem:[%s4 + $0x28] sm:$0xff] %vm235, %v182
    %242 = vst.msk [vmem:[%s4 + $0x30] sm:$0xff] %vm235, %v187
    %243 = vst.msk [vmem:[%s4 + $0x38] sm:$0xff] %vm235, %v192
    %244 = vst.msk [vmem:[%s4 + $0x40] sm:$0xff] %vm235, %v197
    %245 = vst.msk [vmem:[%s4 + $0x48] sm:$0xff] %vm235, %v202
    %246 = vst.msk [vmem:[%s4 + $0x50] sm:$0xff] %vm235, %v207
    %247 = vst.msk [vmem:[%s4 + $0x58] sm:$0xff] %vm235, %v212
    %248 = vst.msk [vmem:[%s4 + $0x60] sm:$0xff] %vm235, %v217
    %249 = vst.msk [vmem:[%s4 + $0x68] sm:$0xff] %vm235, %v222
    %250 = vst.msk [vmem:[%s4 + $0x70] sm:$0xff] %vm235, %v227
    %251 = vst.msk [vmem:[%s4 + $0x78] sm:$0xff] %vm235, %v232
    %v252 = vld [vmem:[%s2] sm:$0x1]
    %v254 = vlaneseq
    %v255 = vshrl.u32 %v254, 7
    %v256 = vsub.s32 0, %v255
    %v257 = vrot.slane %v252, %v256
    %v259 = vmul.f32 %v157, %v257
    %v260 = vmul.f32 %v162, %v257
    %v261 = vmul.f32 %v167, %v257
    %v262 = vmul.f32 %v172, %v257
    %v263 = vmul.f32 %v177, %v257
    %v264 = vmul.f32 %v182, %v257
    %v265 = vmul.f32 %v187, %v257
    %v266 = vmul.f32 %v192, %v257
    %v267 = vmul.f32 %v197, %v257
    %v268 = vmul.f32 %v202, %v257
    %v269 = vmul.f32 %v207, %v257
    %v270 = vmul.f32 %v212, %v257
    %v271 = vmul.f32 %v217, %v257
    %v272 = vmul.f32 %v222, %v257
    %v273 = vmul.f32 %v227, %v257
    %v274 = vmul.f32 %v232, %v257
    %v275 = vsel %vm235, %v259, 0.0
    %276 = vadd.xlane.f32.xlu0 %v275
    %v277 = vpop.xlane.xlu0 %276
    %v278 = vsel %vm235, %v260, 0.0
    %279 = vadd.xlane.f32.xlu0 %v278
    %v280 = vpop.xlane.xlu0 %279
    %v281 = vsel %vm235, %v261, 0.0
    %282 = vadd.xlane.f32.xlu0 %v281
    %v283 = vpop.xlane.xlu0 %282
    %v284 = vsel %vm235, %v262, 0.0
    %285 = vadd.xlane.f32.xlu0 %v284
    %v286 = vpop.xlane.xlu0 %285
    %v287 = vsel %vm235, %v263, 0.0
    %288 = vadd.xlane.f32.xlu0 %v287
    %v289 = vpop.xlane.xlu0 %288
    %v290 = vsel %vm235, %v264, 0.0
    %291 = vadd.xlane.f32.xlu0 %v290
    %v292 = vpop.xlane.xlu0 %291
    %v293 = vsel %vm235, %v265, 0.0
    %294 = vadd.xlane.f32.xlu0 %v293
    %v295 = vpop.xlane.xlu0 %294
    %v296 = vsel %vm235, %v266, 0.0
    %297 = vadd.xlane.f32.xlu0 %v296
    %v298 = vpop.xlane.xlu0 %297
    %v299 = vsel %vm235, %v267, 0.0
    %300 = vadd.xlane.f32.xlu0 %v299
    %v301 = vpop.xlane.xlu0 %300
    %v302 = vsel %vm235, %v268, 0.0
    %303 = vadd.xlane.f32.xlu0 %v302
    %v304 = vpop.xlane.xlu0 %303
    %v305 = vsel %vm235, %v269, 0.0
    %306 = vadd.xlane.f32.xlu0 %v305
    %v307 = vpop.xlane.xlu0 %306
    %v308 = vsel %vm235, %v270, 0.0
    %309 = vadd.xlane.f32.xlu0 %v308
    %v310 = vpop.xlane.xlu0 %309
    %v311 = vsel %vm235, %v271, 0.0
    %312 = vadd.xlane.f32.xlu0 %v311
    %v313 = vpop.xlane.xlu0 %312
    %v314 = vsel %vm235, %v272, 0.0
    %315 = vadd.xlane.f32.xlu0 %v314
    %v316 = vpop.xlane.xlu0 %315
    %v317 = vsel %vm235, %v273, 0.0
    %318 = vadd.xlane.f32.xlu0 %v317
    %v319 = vpop.xlane.xlu0 %318
    %v320 = vsel %vm235, %v274, 0.0
    %321 = vadd.xlane.f32.xlu0 %v320
    %v322 = vpop.xlane.xlu0 %321
    %vm323 = vcmask 7168
    %324 = vst.msk [vmem:[%s5] sm:$0xff] %vm323, %v277
    %325 = vst.msk [vmem:[%s5 + $0x8] sm:$0xff] %vm323, %v280
    %326 = vst.msk [vmem:[%s5 + $0x10] sm:$0xff] %vm323, %v283
    %327 = vst.msk [vmem:[%s5 + $0x18] sm:$0xff] %vm323, %v286
    %328 = vst.msk [vmem:[%s5 + $0x20] sm:$0xff] %vm323, %v289
    %329 = vst.msk [vmem:[%s5 + $0x28] sm:$0xff] %vm323, %v292
    %330 = vst.msk [vmem:[%s5 + $0x30] sm:$0xff] %vm323, %v295
    %331 = vst.msk [vmem:[%s5 + $0x38] sm:$0xff] %vm323, %v298
    %332 = vst.msk [vmem:[%s5 + $0x40] sm:$0xff] %vm323, %v301
    %333 = vst.msk [vmem:[%s5 + $0x48] sm:$0xff] %vm323, %v304
    %334 = vst.msk [vmem:[%s5 + $0x50] sm:$0xff] %vm323, %v307
    %335 = vst.msk [vmem:[%s5 + $0x58] sm:$0xff] %vm323, %v310
    %336 = vst.msk [vmem:[%s5 + $0x60] sm:$0xff] %vm323, %v313
    %337 = vst.msk [vmem:[%s5 + $0x68] sm:$0xff] %vm323, %v316
    %338 = vst.msk [vmem:[%s5 + $0x70] sm:$0xff] %vm323, %v319
    %339 = vst.msk [vmem:[%s5 + $0x78] sm:$0xff] %vm323, %v322
    %v340 = vld [vmem:[%s3] sm:$0xff]
    %v341 = vld [vmem:[%s3 + $0x8] sm:$0xff]
    %v342 = vld [vmem:[%s3 + $0x10] sm:$0xff]
    %v343 = vld [vmem:[%s3 + $0x18] sm:$0xff]
    %v344 = vld [vmem:[%s3 + $0x20] sm:$0xff]
    %v345 = vld [vmem:[%s3 + $0x28] sm:$0xff]
    %v346 = vld [vmem:[%s3 + $0x30] sm:$0xff]
    %v347 = vld [vmem:[%s3 + $0x38] sm:$0xff]
    %348 = vxpose.xlu0.b32.start [1/16] %v340, 128
    %349 = vxpose.xlu0.b32.cont [2/16] %v341, 128
    %350 = vxpose.xlu0.b32.cont [3/16] %v342, 128
    %351 = vxpose.xlu0.b32.cont [4/16] %v343, 128
    %352 = vxpose.xlu0.b32.cont [5/16] %v344, 128
    %353 = vxpose.xlu0.b32.cont [6/16] %v345, 128
    %354 = vxpose.xlu0.b32.cont [7/16] %v346, 128
    %355 = vxpose.xlu0.b32.cont [8/16] %v347, 128
    %356 = vxpose.xlu0.b32.cont [9/16] 0.0, 128
    %357 = vxpose.xlu0.b32.cont [10/16] 0.0, 128
    %358 = vxpose.xlu0.b32.cont [11/16] 0.0, 128
    %359 = vxpose.xlu0.b32.cont [12/16] 0.0, 128
    %360 = vxpose.xlu0.b32.cont [13/16] 0.0, 128
    %361 = vxpose.xlu0.b32.cont [14/16] 0.0, 128
    %362 = vxpose.xlu0.b32.cont [15/16] 0.0, 128
    %363 = vxpose.xlu0.b32.end [16/16] 0.0, 128
    %v364 = vpop.trf.xlu0
    %v365 = vpop.trf.xlu0
    %v366 = vpop.trf.xlu0
    %v367 = vpop.trf.xlu0
    %v368 = vpop.trf.xlu0
    %v369 = vpop.trf.xlu0
    %v370 = vpop.trf.xlu0
    %v371 = vpop.trf.xlu0
    %v372 = vpop.trf.xlu0
    %v373 = vpop.trf.xlu0
    %v374 = vpop.trf.xlu0
    %v375 = vpop.trf.xlu0
    %v376 = vpop.trf.xlu0
    %v377 = vpop.trf.xlu0
    %v378 = vpop.trf.xlu0
    %v379 = vpop.trf.xlu0
    %v381 = vsel %vm235, %v364, 0
    %v384 = vsel %vm235, %v157, 0
    %v387 = vsel %vm235, %v162, 0
    %v390 = vsel %vm235, %v167, 0
    %v393 = vsel %vm235, %v172, 0
    %v396 = vsel %vm235, %v177, 0
    %v399 = vsel %vm235, %v182, 0
    %v402 = vsel %vm235, %v187, 0
    %v405 = vsel %vm235, %v192, 0
    %v408 = vsel %vm235, %v197, 0
    %v411 = vsel %vm235, %v202, 0
    %v414 = vsel %vm235, %v207, 0
    %v417 = vsel %vm235, %v212, 0
    %v420 = vsel %vm235, %v217, 0
    %v423 = vsel %vm235, %v222, 0
    %v426 = vsel %vm235, %v227, 0
    %v429 = vsel %vm235, %v232, 0
    %431 = vmatprep.subr.mxu0 0.0
    %432 = vmatpush1.xpose.msra.mxu0 %v384
    %433 = vmatprep.subr.mxu0 0.0
    %434 = vmatpush1.xpose.msra.mxu0 %v387
    %435 = vmatprep.subr.mxu0 0.0
    %436 = vmatpush1.xpose.msra.mxu0 %v390
    %437 = vmatprep.subr.mxu0 0.0
    %438 = vmatpush1.xpose.msra.mxu0 %v393
    %439 = vmatprep.subr.mxu0 0.0
    %440 = vmatpush1.xpose.msra.mxu0 %v396
    %441 = vmatprep.subr.mxu0 0.0
    %442 = vmatpush1.xpose.msra.mxu0 %v399
    %443 = vmatprep.subr.mxu0 0.0
    %444 = vmatpush1.xpose.msra.mxu0 %v402
    %445 = vmatprep.subr.mxu0 0.0
    %446 = vmatpush1.xpose.msra.mxu0 %v405
    %447 = vmatprep.subr.mxu0 0.0
    %448 = vmatpush1.xpose.msra.mxu0 %v408
    %449 = vmatprep.subr.mxu0 0.0
    %450 = vmatpush1.xpose.msra.mxu0 %v411
    %451 = vmatprep.subr.mxu0 0.0
    %452 = vmatpush1.xpose.msra.mxu0 %v414
    %453 = vmatprep.subr.mxu0 0.0
    %454 = vmatpush1.xpose.msra.mxu0 %v417
    %455 = vmatprep.subr.mxu0 0.0
    %456 = vmatpush1.xpose.msra.mxu0 %v420
    %457 = vmatprep.subr.mxu0 0.0
    %458 = vmatpush1.xpose.msra.mxu0 %v423
    %459 = vmatprep.subr.mxu0 0.0
    %460 = vmatpush1.xpose.msra.mxu0 %v426
    %461 = vmatprep.subr.mxu0 0.0
    %462 = vmatpush1.xpose.msra.mxu0 %v429
    %463 = vmatprep.subr.mxu0 0.0
    %464 = vmatpush1.xpose.msra.mxu0 0.0
    %465 = vmatprep.subr.mxu0 0.0
    %466 = vmatpush1.xpose.msra.mxu0 0.0
    %467 = vmatprep.subr.mxu0 0.0
    %468 = vmatpush1.xpose.msra.mxu0 0.0
    %469 = vmatprep.subr.mxu0 0.0
    %470 = vmatpush1.xpose.msra.mxu0 0.0
    %471 = vmatprep.subr.mxu0 0.0
    %472 = vmatpush1.xpose.msra.mxu0 0.0
    %473 = vmatprep.subr.mxu0 0.0
    %474 = vmatpush1.xpose.msra.mxu0 0.0
    %475 = vmatprep.subr.mxu0 0.0
    %476 = vmatpush1.xpose.msra.mxu0 0.0
    %477 = vmatprep.subr.mxu0 0.0
    %478 = vmatpush1.xpose.msra.mxu0 0.0
    %479 = vmatprep.subr.mxu0 0.0
    %480 = vmatpush1.xpose.msra.mxu0 0.0
    %481 = vmatprep.subr.mxu0 0.0
    %482 = vmatpush1.xpose.msra.mxu0 0.0
    %483 = vmatprep.subr.mxu0 0.0
    %484 = vmatpush1.xpose.msra.mxu0 0.0
    %485 = vmatprep.subr.mxu0 0.0
    %486 = vmatpush1.xpose.msra.mxu0 0.0
    %487 = vmatprep.subr.mxu0 0.0
    %488 = vmatpush1.xpose.msra.mxu0 0.0
    %489 = vmatprep.subr.mxu0 0.0
    %490 = vmatpush1.xpose.msra.mxu0 0.0
    %491 = vmatprep.subr.mxu0 0.0
    %492 = vmatpush1.xpose.msra.mxu0 0.0
    %493 = vmatprep.subr.mxu0 0.0
    %494 = vmatpush1.xpose.msra.mxu0 0.0
    %495 = vmatprep.mubr.f32.mxu0 0.0
    %496 = vmatmul.mubr.f32.gmra.mrb[0].mxu0 %v381
    %v497 = vpop.f32.mrb[0].mxu0
    %v498 = vadd.f32 0.0, %v497
    %v499 = vpop.f32.mrb[0].mxu0
    %500 = vdwg.mxu0
    %501 = vst [vmem:[#allocation2] sm:$0x1] %v498
    // Predicated region
    $region18: #{tpu_custom_call.1} parent=1 // pred_check
      _
    $region19: #{tpu_custom_call.1} parent=1 // pred_check_branch
      %503 = sbr.rel (0) target = $region21
    $region20: #{tpu_custom_call.1} parent=1 // pred_region
      _
    $region21: #{tpu_custom_call.1} parent=1 // pred_fallthru
      _
    // Predicated region
    $region22: #{tpu_custom_call.1} parent=1 // pred_check
      _
    $region23: #{tpu_custom_call.1} parent=1 // pred_check_branch
      %505 = sbr.rel (0) target = $region25
    $region24: #{tpu_custom_call.1} parent=1 // pred_region
      _
    $region25: #{tpu_custom_call.1} parent=1 // pred_fallthru
      _
    // Predicated region
    $region26: #{tpu_custom_call.1} parent=1 // pred_check
      _
    $region27: #{tpu_custom_call.1} parent=1 // pred_check_branch
      %507 = sbr.rel (0) target = $region29
    $region28: #{tpu_custom_call.1} parent=1 // pred_region
      %s509 = ssub.s32 16, 16
      %510 = vsyncadd [#allocation3], %s509
      %s512 = sshll.u32 [#allocation2], 4
      %s513 = int_to_ptr.vmem [resolvable:$true] %s512
      %515 = dma.vmem_to_hbm [thread:$0]  %s513, 16, %s6, [#allocation3]
    $region29: #{tpu_custom_call.1} parent=1 // pred_fallthru
      _
    // Predicated region
    $region30: #{tpu_custom_call.1} parent=1 // pred_check
      _
    $region31: #{tpu_custom_call.1} parent=1 // pred_check_branch
      %517 = sbr.rel (0) target = $region33
    $region32: #{tpu_custom_call.1} parent=1 // pred_region
      _
    $region33: #{tpu_custom_call.1} parent=1 // pred_fallthru
      _
    // Predicated region
    $region34: #{tpu_custom_call.1} parent=1 // pred_check
      _
    $region35: #{tpu_custom_call.1} parent=1 // pred_check_branch
      %519 = sbr.rel (0) target = $region37
    $region36: #{tpu_custom_call.1} parent=1 // pred_region
      _
    $region37: #{tpu_custom_call.1} parent=1 // pred_fallthru
      _
    // Predicated region
    $region38: #{tpu_custom_call.1} parent=1 // pred_check
      _
    $region39: #{tpu_custom_call.1} parent=1 // pred_check_branch
      %521 = sbr.rel (0) target = $region41
    $region40: #{tpu_custom_call.1} parent=1 // pred_region
      %522 = dma.done [#allocation3], 16
    $region41: #{tpu_custom_call.1} parent=1 // pred_fallthru
      _
    %523 = vsyncpa [#allocation3], 1

</llo_original>
